<compile_context>
chip_gen: v6e
topology: v6e:2x2x1
jax: 0.10.0
libtpu: 0.0.40
codegen_flags: <defaults>
</compile_context>

<pallas_src>
import functools
import math

import jax
import jax.numpy as jnp
from jax import lax
from jax.experimental import pallas as pl
from jax.experimental.pallas import tpu as pltpu


def _round_up(a, b):
    return (a + b - 1) // b * b


def _label_smoothing_kernel(x_ref, tgt_ref, out_ref, *,
                            n_rows, vocab, padding_idx, tm, tv,
                            last_j, ragged_v, pad_tile, pad_local,
                            confidence, smooth_val, c_row):
    i = pl.program_id(0)
    j = pl.program_id(1)

    x = x_ref[...].astype(jnp.float32)      # (tm, tv); ragged tails hold garbage
    tgt = tgt_ref[...]                      # (tm, 1) int32 targets

    # Row validity: inside the real N rows and target != padding_idx.
    row = lax.broadcasted_iota(jnp.int32, (tm, 1), 0) + i * tm
    valid_row = (row < n_rows) & (tgt != padding_idx)          # (tm, 1)

    # One-hot of the target column inside this vocab tile (local indices).
    col = lax.broadcasted_iota(jnp.int32, (tm, tv), 1)
    onehot = col == (tgt - j * tv)                             # (tm, tv)

    # Init the per-row-tile accumulator and add the per-valid-row constant
    #   C_row = confidence*log(confidence) + smoothing*log(smooth_val)
    @pl.when(j == 0)
    def _init():
        nvalid = jnp.sum(valid_row.astype(jnp.float32))
        out_ref[...] = jnp.zeros_like(out_ref) + jnp.float32(c_row) * nvalid

    def accumulate(mask_cols):
        if mask_cols:
            # Only emitted for the (statically known) ragged last vocab tile.
            vmax_local = vocab - last_j * tv            # static Python int
            xs = jnp.where(col < vmax_local, x, 0.0)
        else:
            xs = x
        # Sum of x over all in-range columns of this tile, per row.
        s_rows = jnp.sum(xs, axis=1, keepdims=True)                          # (tm, 1)
        # x at the target column (zero if the target is not in this tile).
        t_rows = jnp.sum(jnp.where(onehot, x, 0.0), axis=1, keepdims=True)   # (tm, 1)
        s_tile = jnp.sum(jnp.where(valid_row, s_rows, 0.0))
        t_tile = jnp.sum(jnp.where(valid_row, t_rows, 0.0))
        out_ref[...] += (-jnp.float32(smooth_val) * s_tile
                         - jnp.float32(confidence - smooth_val) * t_tile)

    if ragged_v:
        @pl.when(j == last_j)
        def _ragged():
            accumulate(True)

        @pl.when(j != last_j)
        def _full():
            accumulate(False)
    else:
        accumulate(False)

    # padding_idx column carries true_dist == 0: add back its smooth term.
    @pl.when(j == pad_tile)
    def _pad_col():
        p_col = x[:, pad_local:pad_local + 1]                  # static slice, (tm, 1)
        p = jnp.sum(jnp.where(valid_row, p_col, 0.0))
        out_ref[...] += jnp.float32(smooth_val) * p


@functools.partial(jax.jit, static_argnames=("padding_idx", "smoothing", "tm", "tv"))
def label_smoothing_loss(x, target, *, padding_idx, smoothing, tm=256, tv=4096):
    """x: (N, vocab) log-probabilities; target: (N,) int labels. Returns scalar sum-KLDiv."""
    n, vocab = x.shape
    assert vocab > 2, "smoothing/(size-2) requires size > 2"
    assert 0 <= padding_idx < vocab

    confidence = 1.0 - smoothing
    smooth_val = smoothing / (vocab - 2)
    log_conf = math.log(confidence) if confidence > 0.0 else 0.0
    log_smooth = math.log(smooth_val) if smooth_val > 0.0 else 0.0
    c_row = confidence * log_conf + smoothing * log_smooth

    # Tile sizes: rows multiple of 8 (f32 sublane), vocab multiple of 128 (lane).
    tm_eff = min(_round_up(tm, 8), _round_up(n, 8))
    tv_eff = min(_round_up(tv, 128), _round_up(vocab, 128))
    grid = (pl.cdiv(n, tm_eff), pl.cdiv(vocab, tv_eff))

    last_j = grid[1] - 1
    ragged_v = (vocab % tv_eff) != 0
    pad_tile = padding_idx // tv_eff
    pad_local = padding_idx - pad_tile * tv_eff

    tgt = target.astype(jnp.int32).reshape(n, 1)

    kernel = functools.partial(
        _label_smoothing_kernel,
        n_rows=n, vocab=vocab, padding_idx=int(padding_idx),
        tm=tm_eff, tv=tv_eff, last_j=last_j, ragged_v=ragged_v,
        pad_tile=pad_tile, pad_local=pad_local,
        confidence=float(confidence), smooth_val=float(smooth_val),
        c_row=float(c_row))

    partials = pl.pallas_call(
        kernel,
        out_shape=jax.ShapeDtypeStruct((grid[0], 128), jnp.float32),
        grid_spec=pltpu.PrefetchScalarGridSpec(
            num_scalar_prefetch=0,
            grid=grid,
            in_specs=[
                pl.BlockSpec((tm_eff, tv_eff), lambda i, j: (i, j)),   # x tile
                pl.BlockSpec((tm_eff, 1), lambda i, j: (i, 0)),        # target column
            ],
            # Per-row-tile partial sum, resident across the vocab axis.
            out_specs=pl.BlockSpec((1, 128), lambda i, j: (i, 0)),
        ),
        compiler_params=pltpu.CompilerParams(
            dimension_semantics=("parallel", "arbitrary")),
        cost_estimate=pl.CostEstimate(
            flops=6 * n * vocab,
            transcendentals=0,
            bytes_accessed=n * vocab * x.dtype.itemsize + n * 4 + grid[0] * 128 * 4),
    )(x, tgt)

    # Tiny final reduce over the per-row-tile partials (all lanes hold the same value).
    return jnp.sum(partials[:, 0])


def _reference(x, target, padding_idx, smoothing):
    """Pure-JAX reference matching PyTorch LabelSmoothing forward."""
    n, vocab = x.shape
    confidence = 1.0 - smoothing
    smooth_val = smoothing / (vocab - 2)
    true_dist = jnp.full((n, vocab), smooth_val, dtype=jnp.float32)
    true_dist = true_dist.at[jnp.arange(n), target].set(confidence)
    true_dist = true_dist.at[:, padding_idx].set(0.0)
    true_dist = jnp.where((target == padding_idx)[:, None], 0.0, true_dist)
    safe = jnp.where(true_dist > 0, true_dist, 1.0)
    contrib = jnp.where(true_dist > 0,
                        true_dist * (jnp.log(safe) - x.astype(jnp.float32)),
                        0.0)
    return jnp.sum(contrib)


if __name__ == "__main__":
    key = jax.random.PRNGKey(0)
    k1, k2, k3, k4 = jax.random.split(key, 4)

    # Case 1: the Annotated-Transformer toy setting (small shapes).
    batch, seq, vocab = 2, 10, 11
    padding_idx, smoothing = 0, 0.1
    logits = jax.random.normal(k1, (batch * seq, vocab), dtype=jnp.float32)
    x = jax.nn.log_softmax(logits, axis=-1)            # KLDivLoss expects log-probs
    target = jax.random.randint(k2, (batch * seq,), 0, vocab, dtype=jnp.int32)

    loss = label_smoothing_loss(x, target, padding_idx=padding_idx, smoothing=smoothing)
    loss = jax.block_until_ready(loss)
    loss_ref = _reference(x, target, padding_idx, smoothing)
    assert loss.shape == ()
    assert jnp.allclose(loss, loss_ref, atol=1e-4, rtol=1e-4), (loss, loss_ref)

    # Case 2: multi-tile, ragged rows + vocab, nonzero padding_idx.
    n2, vocab2, pad2, sm2 = 300, 1500, 2, 0.1
    logits2 = jax.random.normal(k3, (n2, vocab2), dtype=jnp.float32)
    x2 = jax.nn.log_softmax(logits2, axis=-1)
    target2 = jax.random.randint(k4, (n2,), 0, vocab2, dtype=jnp.int32)

    loss2 = label_smoothing_loss(x2, target2, padding_idx=pad2, smoothing=sm2,
                                 tm=64, tv=256)
    loss2 = jax.block_until_ready(loss2)
    loss2_ref = _reference(x2, target2, pad2, sm2)
    assert jnp.allclose(loss2, loss2_ref, atol=1e-3, rtol=1e-4), (loss2, loss2_ref)

    print("KERNEL_OK")
</pallas_src>

<mosaic_0001>
module attributes {stable_mosaic.version = 11 : i64} {
  func.func @_label_smoothing_kernel(%arg0: i32, %arg1: i32, %arg2: memref<24x128xf32, #tpu.memory_space<vmem>>, %arg3: memref<24x1xi32, #tpu.memory_space<vmem>>, %arg4: memref<1x128xf32, #tpu.memory_space<vmem>>) attributes {dimension_semantics = [#tpu.dimension_semantics<parallel>, #tpu.dimension_semantics<arbitrary>], iteration_bounds = array<i64: 1, 1>, scalar_prefetch = 0 : i64, scratch_operands = 0 : i64, tpu.core_type = #tpu.core_type<tc>, window_params = [{transform_indices = @transform_0, window_bounds = array<i64: 24, 128>}, {transform_indices = @transform_1, window_bounds = array<i64: 24, 1>}, {transform_indices = @transform_2, window_bounds = array<i64: 1, 128>}]} {
    %c0 = arith.constant 0 : index
    %c0_0 = arith.constant 0 : index
    %0 = vector.load %arg2[%c0, %c0_0] : memref<24x128xf32, #tpu.memory_space<vmem>>, vector<24x128xf32>
    %c0_1 = arith.constant 0 : index
    %c0_2 = arith.constant 0 : index
    %1 = vector.load %arg3[%c0_1, %c0_2] : memref<24x1xi32, #tpu.memory_space<vmem>>, vector<24x1xi32>
    %2 = tpu.iota {dimensions = array<i32: 0>} : vector<24x1xi32>
    %c24_i32 = arith.constant 24 : i32
    %3 = arith.muli %arg0, %c24_i32 : i32
    %4 = vector.broadcast %3 : i32 to vector<24x1xi32>
    %5 = arith.addi %2, %4 : vector<24x1xi32>
    %c20_i32 = arith.constant 20 : i32
    %6 = vector.broadcast %c20_i32 : i32 to vector<24x1xi32>
    %7 = arith.cmpi slt, %5, %6 : vector<24x1xi32>
    %c0_i32 = arith.constant 0 : i32
    %8 = vector.broadcast %c0_i32 : i32 to vector<24x1xi32>
    %9 = arith.cmpi ne, %1, %8 : vector<24x1xi32>
    %10 = arith.andi %7, %9 : vector<24x1xi1>
    %11 = tpu.iota {dimensions = array<i32: 1>} : vector<24x128xi32>
    %c128_i32 = arith.constant 128 : i32
    %12 = arith.muli %arg1, %c128_i32 : i32
    %13 = vector.broadcast %12 : i32 to vector<24x1xi32>
    %14 = arith.subi %1, %13 : vector<24x1xi32>
    %15 = vector.broadcast %14 : vector<24x1xi32> to vector<24x128xi32>
    %16 = arith.cmpi eq, %11, %15 : vector<24x128xi32>
    %c0_i32_3 = arith.constant 0 : i32
    %17 = arith.cmpi eq, %arg1, %c0_i32_3 : i32
    %18 = arith.extui %17 : i1 to i32
    %c0_i32_4 = arith.constant 0 : i32
    %19 = arith.cmpi ne, %18, %c0_i32_4 : i32
    scf.if %19 {
      %29 = arith.extui %10 : vector<24x1xi1> to vector<24x1xi32>
      %30 = arith.sitofp %29 : vector<24x1xi32> to vector<24x1xf32>
      %31 = vector.shape_cast %30 : vector<24x1xf32> to vector<1x24x1xf32>
      %cst = arith.constant dense<0.000000e+00> : vector<1xf32>
      %32 = vector.multi_reduction <add>, %31, %cst [1, 2] : vector<1x24x1xf32> to vector<1xf32>
      %33 = vector.shape_cast %32 : vector<1xf32> to vector<1x1x1xf32>
      %34 = vector.extract %33[0, 0, 0] : f32 from vector<1x1x1xf32>
      %cst_11 = arith.constant 0.000000e+00 : f32
      %35 = vector.broadcast %cst_11 : f32 to vector<1x128xf32>
      %cst_12 = arith.constant -0.544805408 : f32
      %36 = arith.mulf %cst_12, %34 : f32
      %37 = vector.broadcast %36 : f32 to vector<1x128xf32>
      %38 = arith.addf %35, %37 : vector<1x128xf32>
      %c0_13 = arith.constant 0 : index
      %c0_14 = arith.constant 0 : index
      %39 = vector.load %arg4[%c0_13, %c0_14] : memref<1x128xf32, #tpu.memory_space<vmem>>, vector<1x128xf32>
      tpu.vector_store %arg4[%c0_13, %c0_14], %38 {strides = array<i32>} : memref<1x128xf32, #tpu.memory_space<vmem>>, vector<1x128xf32>,
    } else {
    }
    %c0_i32_5 = arith.constant 0 : i32
    %20 = arith.cmpi eq, %arg1, %c0_i32_5 : i32
    %21 = arith.extui %20 : i1 to i32
    %c0_i32_6 = arith.constant 0 : i32
    %22 = arith.cmpi ne, %21, %c0_i32_6 : i32
    scf.if %22 {
      %c11_i32 = arith.constant 11 : i32
      %29 = vector.broadcast %c11_i32 : i32 to vector<24x128xi32>
      %30 = arith.cmpi slt, %11, %29 : vector<24x128xi32>
      %cst = arith.constant 0.000000e+00 : f32
      %31 = vector.broadcast %cst : f32 to vector<24x128xf32>
      %32 = arith.select %30, %0, %31 : vector<24x128xi1>, vector<24x128xf32>
      %cst_11 = arith.constant dense<0.000000e+00> : vector<24xf32>
      %33 = vector.multi_reduction <add>, %32, %cst_11 [1] : vector<24x128xf32> to vector<24xf32>
      %34 = vector.shape_cast %33 : vector<24xf32> to vector<24x1xf32>
      %cst_12 = arith.constant 0.000000e+00 : f32
      %35 = vector.broadcast %cst_12 : f32 to vector<24x128xf32>
      %36 = arith.select %16, %0, %35 : vector<24x128xi1>, vector<24x128xf32>
      %cst_13 = arith.constant dense<0.000000e+00> : vector<24xf32>
      %37 = vector.multi_reduction <add>, %36, %cst_13 [1] : vector<24x128xf32> to vector<24xf32>
      %38 = vector.shape_cast %37 : vector<24xf32> to vector<24x1xf32>
      %cst_14 = arith.constant 0.000000e+00 : f32
      %39 = vector.broadcast %cst_14 : f32 to vector<24x1xf32>
      %40 = arith.select %10, %34, %39 : vector<24x1xi1>, vector<24x1xf32>
      %41 = vector.shape_cast %40 : vector<24x1xf32> to vector<1x24x1xf32>
      %cst_15 = arith.constant dense<0.000000e+00> : vector<1xf32>
      %42 = vector.multi_reduction <add>, %41, %cst_15 [1, 2] : vector<1x24x1xf32> to vector<1xf32>
      %43 = vector.shape_cast %42 : vector<1xf32> to vector<1x1x1xf32>
      %44 = vector.extract %43[0, 0, 0] : f32 from vector<1x1x1xf32>
      %cst_16 = arith.constant 0.000000e+00 : f32
      %45 = vector.broadcast %cst_16 : f32 to vector<24x1xf32>
      %46 = arith.select %10, %38, %45 : vector<24x1xi1>, vector<24x1xf32>
      %47 = vector.shape_cast %46 : vector<24x1xf32> to vector<1x24x1xf32>
      %cst_17 = arith.constant dense<0.000000e+00> : vector<1xf32>
      %48 = vector.multi_reduction <add>, %47, %cst_17 [1, 2] : vector<1x24x1xf32> to vector<1xf32>
      %49 = vector.shape_cast %48 : vector<1xf32> to vector<1x1x1xf32>
      %50 = vector.extract %49[0, 0, 0] : f32 from vector<1x1x1xf32>
      %c0_18 = arith.constant 0 : index
      %c0_19 = arith.constant 0 : index
      %51 = vector.load %arg4[%c0_18, %c0_19] : memref<1x128xf32, #tpu.memory_space<vmem>>, vector<1x128xf32>
      %cst_20 = arith.constant 0.000000e+00 : f32
      %cst_21 = arith.constant 0.0111111114 : f32
      %52 = arith.subf %cst_20, %cst_21 : f32
      %53 = arith.mulf %52, %44 : f32
      %cst_22 = arith.constant 0.888888895 : f32
      %54 = arith.mulf %cst_22, %50 : f32
      %55 = arith.subf %53, %54 : f32
      %56 = vector.broadcast %55 : f32 to vector<1x128xf32>
      %57 = arith.addf %51, %56 : vector<1x128xf32>
      %c0_23 = arith.constant 0 : index
      %c0_24 = arith.constant 0 : index
      %58 = vector.load %arg4[%c0_23, %c0_24] : memref<1x128xf32, #tpu.memory_space<vmem>>, vector<1x128xf32>
      tpu.vector_store %arg4[%c0_23, %c0_24], %57 {strides = array<i32>} : memref<1x128xf32, #tpu.memory_space<vmem>>, vector<1x128xf32>,
    } else {
    }
    %c0_i32_7 = arith.constant 0 : i32
    %23 = arith.cmpi ne, %arg1, %c0_i32_7 : i32
    %24 = arith.extui %23 : i1 to i32
    %c0_i32_8 = arith.constant 0 : i32
    %25 = arith.cmpi ne, %24, %c0_i32_8 : i32
    scf.if %25 {
      %cst = arith.constant dense<0.000000e+00> : vector<24xf32>
      %29 = vector.multi_reduction <add>, %0, %cst [1] : vector<24x128xf32> to vector<24xf32>
      %30 = vector.shape_cast %29 : vector<24xf32> to vector<24x1xf32>
      %cst_11 = arith.constant 0.000000e+00 : f32
      %31 = vector.broadcast %cst_11 : f32 to vector<24x128xf32>
      %32 = arith.select %16, %0, %31 : vector<24x128xi1>, vector<24x128xf32>
      %cst_12 = arith.constant dense<0.000000e+00> : vector<24xf32>
      %33 = vector.multi_reduction <add>, %32, %cst_12 [1] : vector<24x128xf32> to vector<24xf32>
      %34 = vector.shape_cast %33 : vector<24xf32> to vector<24x1xf32>
      %cst_13 = arith.constant 0.000000e+00 : f32
      %35 = vector.broadcast %cst_13 : f32 to vector<24x1xf32>
      %36 = arith.select %10, %30, %35 : vector<24x1xi1>, vector<24x1xf32>
      %37 = vector.shape_cast %36 : vector<24x1xf32> to vector<1x24x1xf32>
      %cst_14 = arith.constant dense<0.000000e+00> : vector<1xf32>
      %38 = vector.multi_reduction <add>, %37, %cst_14 [1, 2] : vector<1x24x1xf32> to vector<1xf32>
      %39 = vector.shape_cast %38 : vector<1xf32> to vector<1x1x1xf32>
      %40 = vector.extract %39[0, 0, 0] : f32 from vector<1x1x1xf32>
      %cst_15 = arith.constant 0.000000e+00 : f32
      %41 = vector.broadcast %cst_15 : f32 to vector<24x1xf32>
      %42 = arith.select %10, %34, %41 : vector<24x1xi1>, vector<24x1xf32>
      %43 = vector.shape_cast %42 : vector<24x1xf32> to vector<1x24x1xf32>
      %cst_16 = arith.constant dense<0.000000e+00> : vector<1xf32>
      %44 = vector.multi_reduction <add>, %43, %cst_16 [1, 2] : vector<1x24x1xf32> to vector<1xf32>
      %45 = vector.shape_cast %44 : vector<1xf32> to vector<1x1x1xf32>
      %46 = vector.extract %45[0, 0, 0] : f32 from vector<1x1x1xf32>
      %c0_17 = arith.constant 0 : index
      %c0_18 = arith.constant 0 : index
      %47 = vector.load %arg4[%c0_17, %c0_18] : memref<1x128xf32, #tpu.memory_space<vmem>>, vector<1x128xf32>
      %cst_19 = arith.constant 0.000000e+00 : f32
      %cst_20 = arith.constant 0.0111111114 : f32
      %48 = arith.subf %cst_19, %cst_20 : f32
      %49 = arith.mulf %48, %40 : f32
      %cst_21 = arith.constant 0.888888895 : f32
      %50 = arith.mulf %cst_21, %46 : f32
      %51 = arith.subf %49, %50 : f32
      %52 = vector.broadcast %51 : f32 to vector<1x128xf32>
      %53 = arith.addf %47, %52 : vector<1x128xf32>
      %c0_22 = arith.constant 0 : index
      %c0_23 = arith.constant 0 : index
      %54 = vector.load %arg4[%c0_22, %c0_23] : memref<1x128xf32, #tpu.memory_space<vmem>>, vector<1x128xf32>
      tpu.vector_store %arg4[%c0_22, %c0_23], %53 {strides = array<i32>} : memref<1x128xf32, #tpu.memory_space<vmem>>, vector<1x128xf32>,
    } else {
    }
    %c0_i32_9 = arith.constant 0 : i32
    %26 = arith.cmpi eq, %arg1, %c0_i32_9 : i32
    %27 = arith.extui %26 : i1 to i32
    %c0_i32_10 = arith.constant 0 : i32
    %28 = arith.cmpi ne, %27, %c0_i32_10 : i32
    scf.if %28 {
      %29 = vector.extract_strided_slice %0 {offsets = [0, 0], sizes = [24, 1], strides = [1, 1]} : vector<24x128xf32> to vector<24x1xf32>
      %cst = arith.constant 0.000000e+00 : f32
      %30 = vector.broadcast %cst : f32 to vector<24x1xf32>
      %31 = arith.select %10, %29, %30 : vector<24x1xi1>, vector<24x1xf32>
      %32 = vector.shape_cast %31 : vector<24x1xf32> to vector<1x24x1xf32>
      %cst_11 = arith.constant dense<0.000000e+00> : vector<1xf32>
      %33 = vector.multi_reduction <add>, %32, %cst_11 [1, 2] : vector<1x24x1xf32> to vector<1xf32>
      %34 = vector.shape_cast %33 : vector<1xf32> to vector<1x1x1xf32>
      %35 = vector.extract %34[0, 0, 0] : f32 from vector<1x1x1xf32>
      %c0_12 = arith.constant 0 : index
      %c0_13 = arith.constant 0 : index
      %36 = vector.load %arg4[%c0_12, %c0_13] : memref<1x128xf32, #tpu.memory_space<vmem>>, vector<1x128xf32>
      %cst_14 = arith.constant 0.0111111114 : f32
      %37 = arith.mulf %cst_14, %35 : f32
      %38 = vector.broadcast %37 : f32 to vector<1x128xf32>
      %39 = arith.addf %36, %38 : vector<1x128xf32>
      %c0_15 = arith.constant 0 : index
      %c0_16 = arith.constant 0 : index
      %40 = vector.load %arg4[%c0_15, %c0_16] : memref<1x128xf32, #tpu.memory_space<vmem>>, vector<1x128xf32>
      tpu.vector_store %arg4[%c0_15, %c0_16], %39 {strides = array<i32>} : memref<1x128xf32, #tpu.memory_space<vmem>>, vector<1x128xf32>,
    } else {
    }
    return
  }
  func.func @transform_0(%arg0: i32, %arg1: i32) -> (i32, i32) {
    %c0_i32 = arith.constant 0 : i32
    return %arg0, %arg1 : i32, i32
  }
  func.func @transform_1(%arg0: i32, %arg1: i32) -> (i32, i32) {
    %c0_i32 = arith.constant 0 : i32
    %c0_i32_0 = arith.constant 0 : i32
    return %arg0, %c0_i32 : i32, i32
  }
  func.func @transform_2(%arg0: i32, %arg1: i32) -> (i32, i32) {
    %c0_i32 = arith.constant 0 : i32
    %c0_i32_0 = arith.constant 0 : i32
    return %arg0, %c0_i32 : i32, i32
  }
}

</mosaic_0001>

<llo_original>
// kernel: label_smoothing_loss.1
$region0: #{label_smoothing_loss.1}
  #allocation0 [shape = 'u32[]', space=smem, size = 0x4, offset = 0x4, fixed_abs, tag = 'smem constant byte address 0x4 - core index']
  #allocation1 [shape = 'u32[144,128]{1,0:T(1,128)}', space=vmem, size = 0x12000, scoped, tag = 'internal scratch']
  %s0 = inlined_call_operand.vmem [shape: f32[20,11], index: 0, kind: input, shape index: {}]
  %s1 = inlined_call_operand.vmem [shape: s32[20,1], index: 1, kind: input, shape index: {}]
  %s2 = inlined_call_operand.hbm [shape: f32[1,128], index: 2, kind: output, shape index: {}]
  %s3 = sld [smem:[#allocation0]]
  $region30: #{label_smoothing_loss.1} parent=0
    _
  %s5 = ssub.s32 1, %s3
  %s6 = scalar_select 0, %s5, %s3
  $region1: #{label_smoothing_loss.1} parent=0
    #allocation2 [shape = 'u8[512]{0}', space=vmem, size = 0x400, scoped, tag = 'output window, operand 0, single buffered']
    #allocation3 [shape = 's32[1]{0}', space=sflag, size = 0x4, scoped, tag = 'scoped memory for label_smoothing_loss.1']
    %7 = vsyncpa [#allocation3], 0
    // Predicated region
    $region2: #{label_smoothing_loss.1} parent=1 // pred_check
      _
    $region3: #{label_smoothing_loss.1} parent=1 // pred_check_branch
      %9 = sbr.rel (0) target = $region5
    $region4: #{label_smoothing_loss.1} parent=1 // pred_region
      _
    $region5: #{label_smoothing_loss.1} parent=1 // pred_fallthru
      _
    // Predicated region
    $region6: #{label_smoothing_loss.1} parent=1 // pred_check
      _
    $region7: #{label_smoothing_loss.1} parent=1 // pred_check_branch
      %11 = sbr.rel (0) target = $region9
    $region8: #{label_smoothing_loss.1} parent=1 // pred_region
      _
    $region9: #{label_smoothing_loss.1} parent=1 // pred_fallthru
      _
    %v12 = vld [vmem:[%s0] sm:$0xff]
    %v13 = vld [vmem:[%s0 + $0x8] sm:$0xff]
    %v14 = vld [vmem:[%s0 + $0x10] sm:$0xff]
    %v15 = vld [vmem:[%s1] sm:$0xff]
    %v16 = vld [vmem:[%s1 + $0x8] sm:$0xff]
    %v17 = vld [vmem:[%s1 + $0x10] sm:$0xff]
    %v18 = vlaneseq
    %v19 = vshrl.u32 %v18, 7
    %v20 = vadd.s32 %v19, 8
    %v21 = vadd.s32 %v19, 16
    %s22 = smul.u32 0, 24
    %v23 = vstv %s22
    %v24 = vadd.s32 %v19, %v23
    %v25 = vadd.s32 %v20, %v23
    %v26 = vadd.s32 %v21, %v23
    %vm27 = vcmp.lt.s32.totalorder %v24, 20
    %vm28 = vcmp.lt.s32.totalorder %v25, 20
    %vm29 = vcmp.lt.s32.totalorder %v26, 20
    %vm30 = vcmp.ne.s32.totalorder %v15, 0
    %vm31 = vcmp.ne.s32.totalorder %v16, 0
    %vm32 = vcmp.ne.s32.totalorder %v17, 0
    %vm33 = vmand %vm27, %vm30
    %vm34 = vmand %vm28, %vm31
    %vm35 = vmand %vm29, %vm32
    %v36 = vlaneseq
    %v37 = vand.u32 %v36, 127
    %s38 = smul.u32 0, 128
    %v39 = vstv %s38
    %v40 = vsub.s32 %v15, %v39
    %v41 = vsub.s32 %v16, %v39
    %v42 = vsub.s32 %v17, %v39
    %43 = vset.pattern.permute.xlu0 0
    %44 = vperm.xlu0 %43, %v40
    %v45 = vpop.permute.xlu0 %44
    %46 = vset.pattern.permute.xlu0 0
    %47 = vperm.xlu0 %46, %v41
    %v48 = vpop.permute.xlu0 %47
    %49 = vset.pattern.permute.xlu0 0
    %50 = vperm.xlu0 %49, %v42
    %v51 = vpop.permute.xlu0 %50
    %vm52 = vcmp.eq.s32.totalorder %v37, %v45
    %vm53 = vcmp.eq.s32.totalorder %v37, %v48
    %vm54 = vcmp.eq.s32.totalorder %v37, %v51
    %p55 = scmp.eq.s32.totalorder 0, 0
    // Predicated region
    $region10: #{label_smoothing_loss.1} parent=1 // pred_check
      %p56 = pneg %p55
    $region11: #{label_smoothing_loss.1} parent=1 // pred_check_branch
      %58 = sbr.rel (%p56) target = $region13
    $region12: #{label_smoothing_loss.1} parent=1 // pred_region
      %v59 = vsel %vm33, 1, 0
      %v60 = vsel %vm34, 1, 0
      %v61 = vsel %vm35, 1, 0
      %v62 = vcvt.s32.f32 %v59
      %v63 = vcvt.s32.f32 %v60
      %v64 = vcvt.s32.f32 %v61
      %vm65 = vcmask 7168
      %v66 = vsel %vm65, %v62, 0.0
      %v67 = vsel %vm65, %v63, 0.0
      %v68 = vadd.f32 %v66, %v67
      %v69 = vsel %vm65, %v64, 0.0
      %v70 = vadd.f32 %v68, %v69
      %71 = vadd.xlane.f32.xlu0 %v70
      %v72 = vpop.xlane.xlu0 %71
      %v73 = vrot.slane %v72, 4
      %v74 = vadd.f32 %v72, %v73
      %v75 = vrot.slane %v74, 2
      %v76 = vadd.f32 %v74, %v75
      %v77 = vrot.slane %v76, 1
      %v78 = vadd.f32 %v76, %v77
      %s79 = vtos %v78
      %s80 = smul.f32 %s79, -0.5448054
      %v81 = vstv %s80
      %v82 = vadd.f32 %v81, 0.0
      %83 = vst [vmem:[#allocation2] sm:$0x1] %v82
      %vm84 = vcmp.lt.s32.totalorder %v37, 11
      %v85 = vsel %vm84, %v12, 0.0
      %v86 = vsel %vm84, %v13, 0.0
      %v87 = vsel %vm84, %v14, 0.0
      %88 = vadd.xlane.f32.xlu0 %v85
      %v89 = vpop.xlane.xlu0 %88
      %90 = vadd.xlane.f32.xlu0 %v86
      %v91 = vpop.xlane.xlu0 %90
      %92 = vadd.xlane.f32.xlu0 %v87
      %v93 = vpop.xlane.xlu0 %92
      %v94 = vsel %vm52, %v12, 0.0
      %v95 = vsel %vm53, %v13, 0.0
      %v96 = vsel %vm54, %v14, 0.0
      %97 = vadd.xlane.f32.xlu0 %v94
      %v98 = vpop.xlane.xlu0 %97
      %99 = vadd.xlane.f32.xlu0 %v95
      %v100 = vpop.xlane.xlu0 %99
      %101 = vadd.xlane.f32.xlu0 %v96
      %v102 = vpop.xlane.xlu0 %101
      %v103 = vsel %vm33, %v89, 0.0
      %v104 = vsel %vm34, %v91, 0.0
      %v105 = vsel %vm35, %v93, 0.0
      %v106 = vsel %vm65, %v103, 0.0
      %v107 = vsel %vm65, %v104, 0.0
      %v108 = vadd.f32 %v106, %v107
      %v109 = vsel %vm65, %v105, 0.0
      %v110 = vadd.f32 %v108, %v109
      %111 = vadd.xlane.f32.xlu0 %v110
      %v112 = vpop.xlane.xlu0 %111
      %v113 = vrot.slane %v112, 4
      %v114 = vadd.f32 %v112, %v113
      %v115 = vrot.slane %v114, 2
      %v116 = vadd.f32 %v114, %v115
      %v117 = vrot.slane %v116, 1
      %v118 = vadd.f32 %v116, %v117
      %s119 = vtos %v118
      %v120 = vsel %vm33, %v98, 0.0
      %v121 = vsel %vm34, %v100, 0.0
      %v122 = vsel %vm35, %v102, 0.0
      %v123 = vsel %vm65, %v120, 0.0
      %v124 = vsel %vm65, %v121, 0.0
      %v125 = vadd.f32 %v123, %v124
      %v126 = vsel %vm65, %v122, 0.0
      %v127 = vadd.f32 %v125, %v126
      %128 = vadd.xlane.f32.xlu0 %v127
      %v129 = vpop.xlane.xlu0 %128
      %v130 = vrot.slane %v129, 4
      %v131 = vadd.f32 %v129, %v130
      %v132 = vrot.slane %v131, 2
      %v133 = vadd.f32 %v131, %v132
      %v134 = vrot.slane %v133, 1
      %v135 = vadd.f32 %v133, %v134
      %s136 = vtos %v135
      %v137 = vld [vmem:[#allocation2] sm:$0x1]
      %s138 = smul.f32 %s119, -0.011111111
      %s139 = smul.f32 %s136, 0.8888889
      %s140 = ssub.f32 %s138, %s139
      %v141 = vstv %s140
      %v142 = vadd.f32 %v137, %v141
      %143 = vst [vmem:[#allocation2] sm:$0x1] %v142
    $region13: #{label_smoothing_loss.1} parent=1 // pred_fallthru
      _
    %p144 = scmp.ne.s32.totalorder 0, 0
    // Predicated region
    $region14: #{label_smoothing_loss.1} parent=1 // pred_check
      %p145 = pneg %p144
    $region15: #{label_smoothing_loss.1} parent=1 // pred_check_branch
      %147 = sbr.rel (%p145) target = $region17
    $region16: #{label_smoothing_loss.1} parent=1 // pred_region
      %148 = vadd.xlane.f32.xlu0 %v12
      %v149 = vpop.xlane.xlu0 %148
      %150 = vadd.xlane.f32.xlu0 %v13
      %v151 = vpop.xlane.xlu0 %150
      %152 = vadd.xlane.f32.xlu0 %v14
      %v153 = vpop.xlane.xlu0 %152
      %v154 = vsel %vm52, %v12, 0.0
      %v155 = vsel %vm53, %v13, 0.0
      %v156 = vsel %vm54, %v14, 0.0
      %157 = vadd.xlane.f32.xlu0 %v154
      %v158 = vpop.xlane.xlu0 %157
      %159 = vadd.xlane.f32.xlu0 %v155
      %v160 = vpop.xlane.xlu0 %159
      %161 = vadd.xlane.f32.xlu0 %v156
      %v162 = vpop.xlane.xlu0 %161
      %v163 = vsel %vm33, %v149, 0.0
      %v164 = vsel %vm34, %v151, 0.0
      %v165 = vsel %vm35, %v153, 0.0
      %vm166 = vcmask 7168
      %v167 = vsel %vm166, %v163, 0.0
      %v168 = vsel %vm166, %v164, 0.0
      %v169 = vadd.f32 %v167, %v168
      %v170 = vsel %vm166, %v165, 0.0
      %v171 = vadd.f32 %v169, %v170
      %172 = vadd.xlane.f32.xlu0 %v171
      %v173 = vpop.xlane.xlu0 %172
      %v174 = vrot.slane %v173, 4
      %v175 = vadd.f32 %v173, %v174
      %v176 = vrot.slane %v175, 2
      %v177 = vadd.f32 %v175, %v176
      %v178 = vrot.slane %v177, 1
      %v179 = vadd.f32 %v177, %v178
      %s180 = vtos %v179
      %v181 = vsel %vm33, %v158, 0.0
      %v182 = vsel %vm34, %v160, 0.0
      %v183 = vsel %vm35, %v162, 0.0
      %v184 = vsel %vm166, %v181, 0.0
      %v185 = vsel %vm166, %v182, 0.0
      %v186 = vadd.f32 %v184, %v185
      %v187 = vsel %vm166, %v183, 0.0
      %v188 = vadd.f32 %v186, %v187
      %189 = vadd.xlane.f32.xlu0 %v188
      %v190 = vpop.xlane.xlu0 %189
      %v191 = vrot.slane %v190, 4
      %v192 = vadd.f32 %v190, %v191
      %v193 = vrot.slane %v192, 2
      %v194 = vadd.f32 %v192, %v193
      %v195 = vrot.slane %v194, 1
      %v196 = vadd.f32 %v194, %v195
      %s197 = vtos %v196
      %v198 = vld [vmem:[#allocation2] sm:$0x1]
      %s199 = smul.f32 %s180, -0.011111111
      %s200 = smul.f32 %s197, 0.8888889
      %s201 = ssub.f32 %s199, %s200
      %v202 = vstv %s201
      %v203 = vadd.f32 %v198, %v202
      %204 = vst [vmem:[#allocation2] sm:$0x1] %v203
    $region17: #{label_smoothing_loss.1} parent=1 // pred_fallthru
      _
    // Predicated region
    $region18: #{label_smoothing_loss.1} parent=1 // pred_check
      %p205 = pneg %p55
    $region19: #{label_smoothing_loss.1} parent=1 // pred_check_branch
      %207 = sbr.rel (%p205) target = $region21
    $region20: #{label_smoothing_loss.1} parent=1 // pred_region
      %v208 = vsel %vm33, %v12, 0.0
      %v209 = vsel %vm34, %v13, 0.0
      %v210 = vsel %vm35, %v14, 0.0
      %vm211 = vcmask 7168
      %v212 = vsel %vm211, %v208, 0.0
      %v213 = vsel %vm211, %v209, 0.0
      %v214 = vadd.f32 %v212, %v213
      %v215 = vsel %vm211, %v210, 0.0
      %v216 = vadd.f32 %v214, %v215
      %217 = vadd.xlane.f32.xlu0 %v216
      %v218 = vpop.xlane.xlu0 %217
      %v219 = vrot.slane %v218, 4
      %v220 = vadd.f32 %v218, %v219
      %v221 = vrot.slane %v220, 2
      %v222 = vadd.f32 %v220, %v221
      %v223 = vrot.slane %v222, 1
      %v224 = vadd.f32 %v222, %v223
      %s225 = vtos %v224
      %v226 = vld [vmem:[#allocation2] sm:$0x1]
      %s227 = smul.f32 %s225, 0.011111111
      %v228 = vstv %s227
      %v229 = vadd.f32 %v226, %v228
      %230 = vst [vmem:[#allocation2] sm:$0x1] %v229
    $region21: #{label_smoothing_loss.1} parent=1 // pred_fallthru
      _
    // Predicated region
    $region22: #{label_smoothing_loss.1} parent=1 // pred_check
      _
    $region23: #{label_smoothing_loss.1} parent=1 // pred_check_branch
      %232 = sbr.rel (0) target = $region25
    $region24: #{label_smoothing_loss.1} parent=1 // pred_region
      %s234 = ssub.s32 16, 16
      %235 = vsyncadd [#allocation3], %s234
      %s237 = sshll.u32 [#allocation2], 4
      %s238 = int_to_ptr.vmem [resolvable:$true] %s237
      %240 = dma.vmem_to_hbm [thread:$0]  %s238, 16, %s2, [#allocation3]
    $region25: #{label_smoothing_loss.1} parent=1 // pred_fallthru
      _
    // Predicated region
    $region26: #{label_smoothing_loss.1} parent=1 // pred_check
      _
    $region27: #{label_smoothing_loss.1} parent=1 // pred_check_branch
      %242 = sbr.rel (0) target = $region29
    $region28: #{label_smoothing_loss.1} parent=1 // pred_region
      %243 = dma.done [#allocation3], 16
    $region29: #{label_smoothing_loss.1} parent=1 // pred_fallthru
      _
    %244 = vsyncpa [#allocation3], 1

</llo_original>
